<compile_context>
chip_gen: v7x
topology: tpu7x:2x2x1
jax: 0.10.0
libtpu: 0.0.40
codegen_flags: <defaults>
</compile_context>

<pallas_src>
import math
from functools import partial

import jax
import jax.numpy as jnp
from jax import lax
from jax.experimental import pallas as pl
from jax.experimental.pallas import tpu as pltpu


_INV_SQRT2 = 1.0 / math.sqrt(2.0)
_TANH_C = math.sqrt(2.0 / math.pi)


def _gelu(y, approximate: bool):
    if approximate:
        # tanh-GELU: transcendental goes to the EUP slot instead of a long VALU erf poly.
        return 0.5 * y * (1.0 + jnp.tanh(_TANH_C * (y + 0.044715 * (y * y * y))))
    # Exact erf-GELU (torch.nn.functional.gelu default).
    return 0.5 * y * (1.0 + lax.erf(y * _INV_SQRT2))


def _bert_intermediate_kernel(x_ref, wt_ref, b_ref, o_ref, *, approximate):
    # x_ref: (tm, H) compute dtype; wt_ref: (H, I or tn) compute dtype (pre-transposed
    # -> native MXU contraction); b_ref: (1, I or tn) f32; o_ref: activation dtype.
    y = jnp.dot(x_ref[...], wt_ref[...], preferred_element_type=jnp.float32)
    y = y + b_ref[...]                               # f32 bias add (broadcast over rows)
    o_ref[...] = _gelu(y, approximate).astype(o_ref.dtype)


def _sublane(itemsize: int) -> int:
    return {4: 8, 2: 16, 1: 32}.get(int(itemsize), 8)


def bert_intermediate(hidden_states, weight, bias, *, tm=512, tn=512,
                      compute_dtype=jnp.bfloat16, approximate_gelu=False,
                      weight_resident=None, vmem_budget_bytes=48 << 20):
    """BertIntermediate forward: GELU(hidden_states @ weight.T + bias).

    hidden_states: [..., H]; weight: [I, H] (PyTorch nn.Linear layout); bias: [I].
    compute_dtype: dtype of the MXU operands (accumulation is always f32; the epilogue
      is f32; output dtype follows hidden_states). Default bf16 = fast path on v6e/v7x;
      pass jnp.float32 (or None) for exact f32 operands.
    approximate_gelu: False -> exact erf GELU (PyTorch default); True -> tanh GELU.
    weight_resident: None -> auto (resident iff weight + tiles fit vmem_budget_bytes).
    """
    *lead, H = hidden_states.shape
    I, H_w = weight.shape
    assert H_w == H, f"weight must be [intermediate, hidden] = [{I}, {H}], got {weight.shape}"
    M = 1
    for d in lead:
        M *= int(d)
    out_dtype = hidden_states.dtype
    cdt = jnp.dtype(out_dtype if compute_dtype is None else compute_dtype)

    x2d = hidden_states.reshape(M, H)
    if x2d.dtype != cdt:
        x2d = x2d.astype(cdt)
    w_t = weight.T                                     # [H, I]; one small HBM pass, amortized
    if w_t.dtype != cdt:
        w_t = w_t.astype(cdt)
    b_row = bias.reshape(1, I).astype(jnp.float32)

    # ---- tile sizes (full-H / full-I blocks; only M — and I in streaming — are tiled) ----
    g = _sublane(cdt.itemsize)
    if tm >= M:
        tm_eff = M                                     # single block == full dim (always legal)
    else:
        tm_eff = max(g, (tm // g) * g)                 # sublane-granule multiple (16 for bf16)
    if tn >= I:
        tn_eff = I
    else:
        tn_eff = max(128, (tn // 128) * 128)           # lane-granule multiple

    grid_m = pl.cdiv(M, tm_eff)
    grid_n = pl.cdiv(I, tn_eff)

    out_it = jnp.dtype(out_dtype).itemsize
    w_bytes = H * I * cdt.itemsize
    b_bytes = I * 4

    # Conservative (double-buffered) VMEM footprint of the weight-resident plan.
    resident_need = (2 * (w_bytes + b_bytes)
                     + 2 * tm_eff * H * cdt.itemsize
                     + 2 * tm_eff * I * out_it)
    if weight_resident is None:
        weight_resident = resident_need <= vmem_budget_bytes

    if weight_resident:
        vmem_need = resident_need
        x_streams = 1
    else:
        vmem_need = 2 * (tm_eff * H * cdt.itemsize + tn_eff * H * cdt.itemsize
                         + tn_eff * 4 + tm_eff * tn_eff * out_it)
        x_streams = grid_n                             # x re-streamed once per weight column tile
    vmem_limit = int(min(100 << 20, max(32 << 20, vmem_need + (4 << 20))))

    cost = pl.CostEstimate(
        flops=int(2 * M * H * I),
        transcendentals=int(M * I),
        bytes_accessed=int(M * H * cdt.itemsize * x_streams + w_bytes + b_bytes
                           + M * I * out_it),
    )

    kernel = partial(_bert_intermediate_kernel, approximate=approximate_gelu)

    def _build(single_buffer_resident_blocks: bool):
        res_kw = ({"pipeline_mode": pl.Buffered(1)}
                  if (weight_resident and single_buffer_resident_blocks) else {})
        if weight_resident:
            grid = (grid_m,)
            in_specs = [
                pl.BlockSpec((tm_eff, H), lambda i: (i, 0)),          # x row tile
                pl.BlockSpec((H, I), lambda i: (0, 0), **res_kw),     # resident weight (once)
                pl.BlockSpec((1, I), lambda i: (0, 0), **res_kw),     # resident bias
            ]
            out_specs = pl.BlockSpec((tm_eff, I), lambda i: (i, 0))
            dims = ("parallel",)
        else:
            # Weight tile on the SLOW axis -> full weight read from HBM once; x re-streamed.
            grid = (grid_n, grid_m)
            in_specs = [
                pl.BlockSpec((tm_eff, H), lambda j, i: (i, 0)),
                pl.BlockSpec((H, tn_eff), lambda j, i: (0, j)),
                pl.BlockSpec((1, tn_eff), lambda j, i: (0, j)),
            ]
            out_specs = pl.BlockSpec((tm_eff, tn_eff), lambda j, i: (i, j))
            dims = ("parallel", "parallel")
        return pl.pallas_call(
            kernel,
            out_shape=jax.ShapeDtypeStruct((M, I), out_dtype),
            grid_spec=pltpu.PrefetchScalarGridSpec(
                num_scalar_prefetch=0, grid=grid,
                in_specs=in_specs, out_specs=out_specs),
            compiler_params=pltpu.CompilerParams(
                dimension_semantics=dims, vmem_limit_bytes=vmem_limit),
            cost_estimate=cost,
        )

    try:
        out2d = _build(True)(x2d, w_t, b_row)
    except Exception:
        # Fallback for jax versions without per-BlockSpec pipeline_mode (Buffered) support.
        out2d = _build(False)(x2d, w_t, b_row)

    return out2d.reshape(*lead, I)


def _reference_erf(x, weight, bias):
    y = x @ weight.T + bias
    return 0.5 * y * (1.0 + lax.erf(y / math.sqrt(2.0)))


if __name__ == "__main__":
    key = jax.random.PRNGKey(0)

    # Test 1: default path — weight-resident, bf16 operands (loose tolerance).
    B, S, H, I = 2, 8, 32, 128
    k1, k2, k3, key = jax.random.split(key, 4)
    x = jax.random.normal(k1, (B, S, H), dtype=jnp.float32)
    w = jax.random.normal(k2, (I, H), dtype=jnp.float32) * (1.0 / math.sqrt(H))
    b = jax.random.normal(k3, (I,), dtype=jnp.float32) * 0.02
    ref = _reference_erf(x, w, b)

    out = jax.block_until_ready(bert_intermediate(x, w, b))
    assert out.shape == (B, S, I)
    assert jnp.allclose(out, ref, atol=6e-2, rtol=6e-2), "mismatch (test 1, bf16 resident)"

    # Test 2: f32 operands, small tm -> multi-step M grid reusing the resident weight.
    out = jax.block_until_ready(bert_intermediate(x, w, b, tm=8, compute_dtype=jnp.float32))
    assert jnp.allclose(out, ref, atol=1e-5, rtol=1e-5), "mismatch (test 2, f32 resident)"

    # Test 3: non-divisible shapes (M=7, I=160) — no wrapper padding needed.
    B2, S2, H2, I2 = 1, 7, 32, 160
    k1, k2, k3, key = jax.random.split(key, 4)
    x2 = jax.random.normal(k1, (B2, S2, H2), dtype=jnp.float32)
    w2 = jax.random.normal(k2, (I2, H2), dtype=jnp.float32) * (1.0 / math.sqrt(H2))
    b2 = jax.random.normal(k3, (I2,), dtype=jnp.float32) * 0.02
    out2 = jax.block_until_ready(bert_intermediate(x2, w2, b2, compute_dtype=jnp.float32))
    assert out2.shape == (B2, S2, I2)
    assert jnp.allclose(out2, _reference_erf(x2, w2, b2), atol=1e-5, rtol=1e-5), \
        "mismatch (test 3, non-divisible)"

    # Test 4: forced streaming fallback (weight on the slow grid axis) + tanh GELU.
    B3, S3, H3, I3 = 2, 16, 32, 256
    k1, k2, k3, key = jax.random.split(key, 4)
    x3 = jax.random.normal(k1, (B3, S3, H3), dtype=jnp.float32)
    w3 = jax.random.normal(k2, (I3, H3), dtype=jnp.float32) * (1.0 / math.sqrt(H3))
    b3 = jax.random.normal(k3, (I3,), dtype=jnp.float32) * 0.02
    out3 = jax.block_until_ready(
        bert_intermediate(x3, w3, b3, tm=16, tn=128, compute_dtype=jnp.float32,
                          weight_resident=False, approximate_gelu=True))
    assert out3.shape == (B3, S3, I3)
    assert jnp.allclose(out3, _reference_erf(x3, w3, b3), atol=5e-3, rtol=1e-3), \
        "mismatch (test 4, streaming + tanh GELU)"

    print("KERNEL_OK")
</pallas_src>

<mosaic_0001>
module attributes {stable_mosaic.version = 11 : i64} {
  func.func @_bert_intermediate_kernel(%arg0: i32, %arg1: memref<16x32xbf16, #tpu.memory_space<vmem>>, %arg2: memref<32x128xbf16, #tpu.memory_space<vmem>>, %arg3: memref<1x128xf32, #tpu.memory_space<vmem>>, %arg4: memref<16x128xf32, #tpu.memory_space<vmem>>) attributes {dimension_semantics = [#tpu.dimension_semantics<parallel>], iteration_bounds = array<i64: 1>, scalar_prefetch = 0 : i64, scratch_operands = 0 : i64, tpu.core_type = #tpu.core_type<tc>, window_params = [{transform_indices = @transform_0, window_bounds = array<i64: 16, 32>}, {pipeline_mode = #tpu.pipeline_mode<synchronous>, transform_indices = @transform_1, window_bounds = array<i64: 32, 128>}, {pipeline_mode = #tpu.pipeline_mode<synchronous>, transform_indices = @transform_2, window_bounds = array<i64: 1, 128>}, {transform_indices = @transform_3, window_bounds = array<i64: 16, 128>}]} {
    %c0 = arith.constant 0 : index
    %c0_0 = arith.constant 0 : index
    %0 = vector.load %arg1[%c0, %c0_0] : memref<16x32xbf16, #tpu.memory_space<vmem>>, vector<16x32xbf16>
    %c0_1 = arith.constant 0 : index
    %c0_2 = arith.constant 0 : index
    %1 = vector.load %arg2[%c0_1, %c0_2] : memref<32x128xbf16, #tpu.memory_space<vmem>>, vector<32x128xbf16>
    %cst = arith.constant dense<0.000000e+00> : vector<16x128xf32>
    %2 = tpu.matmul %0, %1, %cst {dimension_numbers = #tpu.dot_dimension_numbers<[1], [0], [0], [1], [0, 0, 1, 1], [], []>} : vector<16x32xbf16>, vector<32x128xbf16>, vector<16x128xf32> -> vector<16x128xf32>
    %c0_3 = arith.constant 0 : index
    %c0_4 = arith.constant 0 : index
    %3 = vector.load %arg3[%c0_3, %c0_4] : memref<1x128xf32, #tpu.memory_space<vmem>>, vector<1x128xf32>
    %4 = vector.broadcast %3 : vector<1x128xf32> to vector<16x128xf32>
    %5 = arith.addf %2, %4 : vector<16x128xf32>
    %cst_5 = arith.constant 5.000000e-01 : f32
    %6 = vector.broadcast %cst_5 : f32 to vector<16x128xf32>
    %7 = arith.mulf %6, %5 : vector<16x128xf32>
    %cst_6 = arith.constant 0.707106769 : f32
    %8 = vector.broadcast %cst_6 : f32 to vector<16x128xf32>
    %9 = arith.mulf %5, %8 : vector<16x128xf32>
    %10 = math.erf %9 : vector<16x128xf32>
    %cst_7 = arith.constant 1.000000e+00 : f32
    %11 = vector.broadcast %cst_7 : f32 to vector<16x128xf32>
    %12 = arith.addf %11, %10 : vector<16x128xf32>
    %13 = arith.mulf %7, %12 : vector<16x128xf32>
    %c0_8 = arith.constant 0 : index
    %c0_9 = arith.constant 0 : index
    %14 = vector.load %arg4[%c0_8, %c0_9] : memref<16x128xf32, #tpu.memory_space<vmem>>, vector<16x128xf32>
    tpu.vector_store %arg4[%c0_8, %c0_9], %13 {strides = array<i32>} : memref<16x128xf32, #tpu.memory_space<vmem>>, vector<16x128xf32>,
    return
  }
  func.func @transform_0(%arg0: i32) -> (i32, i32) {
    %c0_i32 = arith.constant 0 : i32
    %c0_i32_0 = arith.constant 0 : i32
    return %arg0, %c0_i32 : i32, i32
  }
  func.func @transform_1(%arg0: i32) -> (i32, i32) {
    %c0_i32 = arith.constant 0 : i32
    %c0_i32_0 = arith.constant 0 : i32
    %c0_i32_1 = arith.constant 0 : i32
    return %c0_i32, %c0_i32_0 : i32, i32
  }
  func.func @transform_2(%arg0: i32) -> (i32, i32) {
    %c0_i32 = arith.constant 0 : i32
    %c0_i32_0 = arith.constant 0 : i32
    %c0_i32_1 = arith.constant 0 : i32
    return %c0_i32, %c0_i32_0 : i32, i32
  }
  func.func @transform_3(%arg0: i32) -> (i32, i32) {
    %c0_i32 = arith.constant 0 : i32
    %c0_i32_0 = arith.constant 0 : i32
    return %arg0, %c0_i32 : i32, i32
  }
}

module attributes {stable_mosaic.version = 11 : i64} {
  func.func @_bert_intermediate_kernel(%arg0: i32, %arg1: memref<16x32xbf16, #tpu.memory_space<vmem>>, %arg2: memref<32x128xbf16, #tpu.memory_space<vmem>>, %arg3: memref<1x128xf32, #tpu.memory_space<vmem>>, %arg4: memref<16x128xf32, #tpu.memory_space<vmem>>) attributes {dimension_semantics = [#tpu.dimension_semantics<parallel>], iteration_bounds = array<i64: 1>, scalar_prefetch = 0 : i64, scratch_operands = 0 : i64, tpu.core_type = #tpu.core_type<tc>, window_params = [{transform_indices = @transform_0, window_bounds = array<i64: 16, 32>}, {pipeline_mode = #tpu.pipeline_mode<synchronous>, transform_indices = @transform_1, window_bounds = array<i64: 32, 128>}, {pipeline_mode = #tpu.pipeline_mode<synchronous>, transform_indices = @transform_2, window_bounds = array<i64: 1, 128>}, {transform_indices = @transform_3, window_bounds = array<i64: 16, 128>}]} {
    %c0 = arith.constant 0 : index
    %c0_0 = arith.constant 0 : index
    %0 = vector.load %arg1[%c0, %c0_0] : memref<16x32xbf16, #tpu.memory_space<vmem>>, vector<16x32xbf16>
    %c0_1 = arith.constant 0 : index
    %c0_2 = arith.constant 0 : index
    %1 = vector.load %arg2[%c0_1, %c0_2] : memref<32x128xbf16, #tpu.memory_space<vmem>>, vector<32x128xbf16>
    %cst = arith.constant dense<0.000000e+00> : vector<16x128xf32>
    %2 = tpu.matmul %0, %1, %cst {dimension_numbers = #tpu.dot_dimension_numbers<[1], [0], [0], [1], [0, 0, 1, 1], [], []>} : vector<16x32xbf16>, vector<32x128xbf16>, vector<16x128xf32> -> vector<16x128xf32>
    %c0_3 = arith.constant 0 : index
    %c0_4 = arith.constant 0 : index
    %3 = vector.load %arg3[%c0_3, %c0_4] : memref<1x128xf32, #tpu.memory_space<vmem>>, vector<1x128xf32>
    %4 = vector.broadcast %3 : vector<1x128xf32> to vector<16x128xf32>
    %5 = arith.addf %2, %4 : vector<16x128xf32>
    %cst_5 = arith.constant 5.000000e-01 : f32
    %6 = vector.broadcast %cst_5 : f32 to vector<16x128xf32>
    %7 = arith.mulf %6, %5 : vector<16x128xf32>
    %cst_6 = arith.constant 0.707106769 : f32
    %8 = vector.broadcast %cst_6 : f32 to vector<16x128xf32>
    %9 = arith.mulf %5, %8 : vector<16x128xf32>
    %10 = math.erf %9 : vector<16x128xf32>
    %cst_7 = arith.constant 1.000000e+00 : f32
    %11 = vector.broadcast %cst_7 : f32 to vector<16x128xf32>
    %12 = arith.addf %11, %10 : vector<16x128xf32>
    %13 = arith.mulf %7, %12 : vector<16x128xf32>
    %c0_8 = arith.constant 0 : index
    %c0_9 = arith.constant 0 : index
    %14 = vector.load %arg4[%c0_8, %c0_9] : memref<16x128xf32, #tpu.memory_space<vmem>>, vector<16x128xf32>
    tpu.vector_store %arg4[%c0_8, %c0_9], %13 {strides = array<i32>} : memref<16x128xf32, #tpu.memory_space<vmem>>, vector<16x128xf32>,
    return
  }
  func.func @transform_0(%arg0: i32) -> (i32, i32) {
    %c0_i32 = arith.constant 0 : i32
    %c0_i32_0 = arith.constant 0 : i32
    return %arg0, %c0_i32 : i32, i32
  }
  func.func @transform_1(%arg0: i32) -> (i32, i32) {
    %c0_i32 = arith.constant 0 : i32
    %c0_i32_0 = arith.constant 0 : i32
    %c0_i32_1 = arith.constant 0 : i32
    return %c0_i32, %c0_i32_0 : i32, i32
  }
  func.func @transform_2(%arg0: i32) -> (i32, i32) {
    %c0_i32 = arith.constant 0 : i32
    %c0_i32_0 = arith.constant 0 : i32
    %c0_i32_1 = arith.constant 0 : i32
    return %c0_i32, %c0_i32_0 : i32, i32
  }
  func.func @transform_3(%arg0: i32) -> (i32, i32) {
    %c0_i32 = arith.constant 0 : i32
    %c0_i32_0 = arith.constant 0 : i32
    return %arg0, %c0_i32 : i32, i32
  }
}

</mosaic_0001>

<llo_original>
// kernel: tpu_custom_call.1
$region0: #{tpu_custom_call.1}
  #allocation0 [shape = 'u32[]', space=smem, size = 0x4, offset = 0x4, fixed_abs, tag = 'smem constant byte address 0x4 - core index']
  #allocation1 [shape = 'u32[144,128]{1,0:T(1,128)}', space=vmem, size = 0x12000, scoped, tag = 'internal scratch']
  %s0 = inlined_call_operand.hbm [shape: bf16[16,32], index: 0, kind: input, shape index: {}]
  %s1 = inlined_call_operand.hbm [shape: bf16[32,128], index: 1, kind: input, shape index: {}]
  %s2 = inlined_call_operand.vmem [shape: f32[1,128], index: 2, kind: input, shape index: {}]
  %s3 = inlined_call_operand.hbm [shape: f32[16,128], index: 3, kind: output, shape index: {}]
  %s4 = sld [smem:[#allocation0]]
  $region30: #{tpu_custom_call.1} parent=0
    _
  %s6 = ssub.s32 1, %s4
  %s7 = scalar_select 0, %s6, %s4
  $region1: #{tpu_custom_call.1} parent=0
    #allocation2 [shape = 'u8[4096]{0}', space=vmem, size = 0x1000, scoped, tag = 'input window, operand 0, single buffered']
    #allocation3 [shape = 's32[1]{0}', space=sflag, size = 0x4, scoped, tag = 'scoped memory for tpu_custom_call.1']
    #allocation4 [shape = 's32[1]{0}', space=sflag, size = 0x4, scoped, tag = 'scoped memory for tpu_custom_call.1']
    #allocation5 [shape = 'u8[8192]{0}', space=vmem, size = 0x2000, scoped, tag = 'input window, operand 1, single buffered']
    #allocation6 [shape = 's32[1]{0}', space=sflag, size = 0x4, scoped, tag = 'scoped memory for tpu_custom_call.1']
    #allocation7 [shape = 'u8[8192]{0}', space=vmem, size = 0x2000, scoped, tag = 'output window, operand 0, single buffered']
    %8 = vsyncpa [#allocation3], 0
    %9 = vsyncpa [#allocation6], 0
    %10 = vsyncpa [#allocation4], 0
    // Predicated region
    $region2: #{tpu_custom_call.1} parent=1 // pred_check
      _
    $region3: #{tpu_custom_call.1} parent=1 // pred_check_branch
      %12 = sbr.rel (0) target = $region5
    $region4: #{tpu_custom_call.1} parent=1 // pred_region
      %s14 = ssub.s32 128, 128
      %15 = vsyncadd [#allocation3], %s14
      %s16 = sshll.u32 [#allocation2], 4
      %s17 = int_to_ptr.vmem [resolvable:$true] %s16
      %22 = dma.hbm_to_vmem [thread:$0]  %s0, 128, %s17, [#allocation3], 64, 64, 4
    $region5: #{tpu_custom_call.1} parent=1 // pred_fallthru
      _
    // Predicated region
    $region6: #{tpu_custom_call.1} parent=1 // pred_check
      _
    $region7: #{tpu_custom_call.1} parent=1 // pred_check_branch
      %24 = sbr.rel (0) target = $region9
    $region8: #{tpu_custom_call.1} parent=1 // pred_region
      %s26 = ssub.s32 256, 256
      %27 = vsyncadd [#allocation6], %s26
      %s28 = sshll.u32 [#allocation5], 4
      %s29 = int_to_ptr.vmem [resolvable:$true] %s28
      %34 = dma.hbm_to_vmem [thread:$0]  %s1, 256, %s29, [#allocation6], 64, 64, 4
    $region9: #{tpu_custom_call.1} parent=1 // pred_fallthru
      _
    // Predicated region
    $region10: #{tpu_custom_call.1} parent=1 // pred_check
      _
    $region11: #{tpu_custom_call.1} parent=1 // pred_check_branch
      %36 = sbr.rel (0) target = $region13
    $region12: #{tpu_custom_call.1} parent=1 // pred_region
      _
    $region13: #{tpu_custom_call.1} parent=1 // pred_fallthru
      _
    // Predicated region
    $region14: #{tpu_custom_call.1} parent=1 // pred_check
      _
    $region15: #{tpu_custom_call.1} parent=1 // pred_check_branch
      %38 = sbr.rel (0) target = $region17
    $region16: #{tpu_custom_call.1} parent=1 // pred_region
      %39 = dma.done [#allocation3], 128
    $region17: #{tpu_custom_call.1} parent=1 // pred_fallthru
      _
    // Predicated region
    $region18: #{tpu_custom_call.1} parent=1 // pred_check
      _
    $region19: #{tpu_custom_call.1} parent=1 // pred_check_branch
      %41 = sbr.rel (0) target = $region21
    $region20: #{tpu_custom_call.1} parent=1 // pred_region
      %42 = dma.done [#allocation6], 256
    $region21: #{tpu_custom_call.1} parent=1 // pred_fallthru
      _
    %v44 = vld [vmem:[#allocation2] sm:$0xf]
    %v45 = vld [vmem:[#allocation2 + $0x4] sm:$0xf]
    %v46 = vld [vmem:[#allocation5] sm:$0xf]
    %v47 = vld [vmem:[#allocation5 + $0x4] sm:$0xf]
    %v48 = vld [vmem:[#allocation5 + $0x8] sm:$0xf]
    %v49 = vld [vmem:[#allocation5 + $0xc] sm:$0xf]
    %v50 = vld [vmem:[%s2] sm:$0x1]
    %v52 = vlaneseq
    %v53 = vshrl.u32 %v52, 7
    %v54 = vsub.s32 0, %v53
    %v55 = vrot.slane %v50, %v54
    %v59 = vunpack.c.l.b16 %v44
    %v60 = vunpack.c.l.b16 %v45
    %v61 = vpack.c.b16 %v60, %v59
    %v66 = vunpack.c.l.b16 %v46
    %v67 = vunpack.c.l.b16 %v47
    %v68 = vunpack.c.l.b16 %v48
    %v69 = vunpack.c.l.b16 %v49
    %v70 = vpack.c.b16 %v67, %v66
    %v71 = vpack.c.b16 %v69, %v68
    %vm74 = vcmask 261120
    %v76 = vsel %vm74, %v61, 0
    %78 = vmatprep.subr.bf16.mxu0 0
    %79 = vmatpush1.bf16.msra.mxu0 %v70
    %80 = vmatprep.subr.bf16.mxu0 0
    %81 = vmatpush1.bf16.msra.mxu0 %v71
    %82 = vmatprep.subr.bf16.mxu0 0
    %83 = vmatpush1.bf16.msra.mxu0 0
    %84 = vmatprep.subr.bf16.mxu0 0
    %85 = vmatpush1.bf16.msra.mxu0 0
    %86 = vmatprep.subr.bf16.mxu0 0
    %87 = vmatpush1.bf16.msra.mxu0 0
    %88 = vmatprep.subr.bf16.mxu0 0
    %89 = vmatpush1.bf16.msra.mxu0 0
    %90 = vmatprep.subr.bf16.mxu0 0
    %91 = vmatpush1.bf16.msra.mxu0 0
    %92 = vmatprep.subr.bf16.mxu0 0
    %93 = vmatpush1.bf16.msra.mxu0 0
    %94 = vmatprep.subr.bf16.mxu0 0
    %95 = vmatpush1.bf16.msra.mxu0 0
    %96 = vmatprep.subr.bf16.mxu0 0
    %97 = vmatpush1.bf16.msra.mxu0 0
    %98 = vmatprep.subr.bf16.mxu0 0
    %99 = vmatpush1.bf16.msra.mxu0 0
    %100 = vmatprep.subr.bf16.mxu0 0
    %101 = vmatpush1.bf16.msra.mxu0 0
    %102 = vmatprep.subr.bf16.mxu0 0
    %103 = vmatpush1.bf16.msra.mxu0 0
    %104 = vmatprep.subr.bf16.mxu0 0
    %105 = vmatpush1.bf16.msra.mxu0 0
    %106 = vmatprep.subr.bf16.mxu0 0
    %107 = vmatpush1.bf16.msra.mxu0 0
    %108 = vmatprep.subr.bf16.mxu0 0
    %109 = vmatpush1.bf16.msra.mxu0 0
    %110 = vmatprep.mubr.bf16.mxu0 0
    %111 = vmatmul.mubr.bf16.gmra.mrb[0].mxu0 %v76
    %v112 = vpop.f32.mrb[0].mxu0
    %v113 = vadd.f32 %v55, %v112
    %v114 = vpop.f32.mrb[0].mxu0
    %v115 = vpop.f32.mrb[0].mxu0
    %v116 = vadd.f32 %v55, %v115
    %v117 = vpop.f32.mrb[0].mxu0
    %118 = vdwg.mxu0
    %v119 = vmul.f32 %v113, 0.5
    %v120 = vmul.f32 %v116, 0.5
    %v121 = vmul.f32 %v113, 0.70710677
    %v122 = vmul.f32 %v116, 0.70710677
    %v123 = verf.f32.pop %v121
    %v124 = verf.f32.pop %v122
    %v125 = vadd.f32 %v123, 1.0
    %v126 = vadd.f32 %v124, 1.0
    %v127 = vmul.f32 %v119, %v125
    %v128 = vmul.f32 %v120, %v126
    %129 = vst [vmem:[#allocation7] sm:$0xff] %v127
    %130 = vst [vmem:[#allocation7 + $0x8] sm:$0xff] %v128
    // Predicated region
    $region22: #{tpu_custom_call.1} parent=1 // pred_check
      _
    $region23: #{tpu_custom_call.1} parent=1 // pred_check_branch
      %132 = sbr.rel (0) target = $region25
    $region24: #{tpu_custom_call.1} parent=1 // pred_region
      %s134 = ssub.s32 256, 256
      %135 = vsyncadd [#allocation4], %s134
      %s136 = sshll.u32 [#allocation7], 4
      %s137 = int_to_ptr.vmem [resolvable:$true] %s136
      %142 = dma.vmem_to_hbm [thread:$0]  %s137, 256, %s3, [#allocation4], 128, 128, 8
    $region25: #{tpu_custom_call.1} parent=1 // pred_fallthru
      _
    // Predicated region
    $region26: #{tpu_custom_call.1} parent=1 // pred_check
      _
    $region27: #{tpu_custom_call.1} parent=1 // pred_check_branch
      %144 = sbr.rel (0) target = $region29
    $region28: #{tpu_custom_call.1} parent=1 // pred_region
      %145 = dma.done [#allocation4], 256
    $region29: #{tpu_custom_call.1} parent=1 // pred_fallthru
      _
    %146 = vsyncpa [#allocation3], 1
    %147 = vsyncpa [#allocation6], 1
    %148 = vsyncpa [#allocation4], 1

// kernel: tpu_custom_call.1
$region0: #{tpu_custom_call.1}
  #allocation0 [shape = 'u32[]', space=smem, size = 0x4, offset = 0x4, fixed_abs, tag = 'smem constant byte address 0x4 - core index']
  #allocation1 [shape = 'u32[144,128]{1,0:T(1,128)}', space=vmem, size = 0x12000, scoped, tag = 'internal scratch']
  %s0 = inlined_call_operand.hbm [shape: bf16[16,32], index: 0, kind: input, shape index: {}]
  %s1 = inlined_call_operand.hbm [shape: bf16[32,128], index: 1, kind: input, shape index: {}]
  %s2 = inlined_call_operand.vmem [shape: f32[1,128], index: 2, kind: input, shape index: {}]
  %s3 = inlined_call_operand.hbm [shape: f32[16,128], index: 3, kind: output, shape index: {}]
  %s4 = sld [smem:[#allocation0]]
  $region30: #{tpu_custom_call.1} parent=0
    _
  %s6 = ssub.s32 1, %s4
  %s7 = scalar_select 0, %s6, %s4
  $region1: #{tpu_custom_call.1} parent=0
    #allocation2 [shape = 'u8[4096]{0}', space=vmem, size = 0x1000, scoped, tag = 'input window, operand 0, single buffered']
    #allocation3 [shape = 's32[1]{0}', space=sflag, size = 0x4, scoped, tag = 'scoped memory for tpu_custom_call.1']
    #allocation4 [shape = 's32[1]{0}', space=sflag, size = 0x4, scoped, tag = 'scoped memory for tpu_custom_call.1']
    #allocation5 [shape = 'u8[8192]{0}', space=vmem, size = 0x2000, scoped, tag = 'input window, operand 1, single buffered']
    #allocation6 [shape = 's32[1]{0}', space=sflag, size = 0x4, scoped, tag = 'scoped memory for tpu_custom_call.1']
    #allocation7 [shape = 'u8[8192]{0}', space=vmem, size = 0x2000, scoped, tag = 'output window, operand 0, single buffered']
    %8 = vsyncpa [#allocation3], 0
    %9 = vsyncpa [#allocation6], 0
    %10 = vsyncpa [#allocation4], 0
    // Predicated region
    $region2: #{tpu_custom_call.1} parent=1 // pred_check
      _
    $region3: #{tpu_custom_call.1} parent=1 // pred_check_branch
      %12 = sbr.rel (0) target = $region5
    $region4: #{tpu_custom_call.1} parent=1 // pred_region
      %s14 = ssub.s32 128, 128
      %15 = vsyncadd [#allocation3], %s14
      %s16 = sshll.u32 [#allocation2], 4
      %s17 = int_to_ptr.vmem [resolvable:$true] %s16
      %22 = dma.hbm_to_vmem [thread:$0]  %s0, 128, %s17, [#allocation3], 64, 64, 4
    $region5: #{tpu_custom_call.1} parent=1 // pred_fallthru
      _
    // Predicated region
    $region6: #{tpu_custom_call.1} parent=1 // pred_check
      _
    $region7: #{tpu_custom_call.1} parent=1 // pred_check_branch
      %24 = sbr.rel (0) target = $region9
    $region8: #{tpu_custom_call.1} parent=1 // pred_region
      %s26 = ssub.s32 256, 256
      %27 = vsyncadd [#allocation6], %s26
      %s28 = sshll.u32 [#allocation5], 4
      %s29 = int_to_ptr.vmem [resolvable:$true] %s28
      %34 = dma.hbm_to_vmem [thread:$0]  %s1, 256, %s29, [#allocation6], 64, 64, 4
    $region9: #{tpu_custom_call.1} parent=1 // pred_fallthru
      _
    // Predicated region
    $region10: #{tpu_custom_call.1} parent=1 // pred_check
      _
    $region11: #{tpu_custom_call.1} parent=1 // pred_check_branch
      %36 = sbr.rel (0) target = $region13
    $region12: #{tpu_custom_call.1} parent=1 // pred_region
      _
    $region13: #{tpu_custom_call.1} parent=1 // pred_fallthru
      _
    // Predicated region
    $region14: #{tpu_custom_call.1} parent=1 // pred_check
      _
    $region15: #{tpu_custom_call.1} parent=1 // pred_check_branch
      %38 = sbr.rel (0) target = $region17
    $region16: #{tpu_custom_call.1} parent=1 // pred_region
      %39 = dma.done [#allocation3], 128
    $region17: #{tpu_custom_call.1} parent=1 // pred_fallthru
      _
    // Predicated region
    $region18: #{tpu_custom_call.1} parent=1 // pred_check
      _
    $region19: #{tpu_custom_call.1} parent=1 // pred_check_branch
      %41 = sbr.rel (0) target = $region21
    $region20: #{tpu_custom_call.1} parent=1 // pred_region
      %42 = dma.done [#allocation6], 256
    $region21: #{tpu_custom_call.1} parent=1 // pred_fallthru
      _
    %v44 = vld [vmem:[#allocation2] sm:$0xf]
    %v45 = vld [vmem:[#allocation2 + $0x4] sm:$0xf]
    %v46 = vld [vmem:[#allocation5] sm:$0xf]
    %v47 = vld [vmem:[#allocation5 + $0x4] sm:$0xf]
    %v48 = vld [vmem:[#allocation5 + $0x8] sm:$0xf]
    %v49 = vld [vmem:[#allocation5 + $0xc] sm:$0xf]
    %v50 = vld [vmem:[%s2] sm:$0x1]
    %v52 = vlaneseq
    %v53 = vshrl.u32 %v52, 7
    %v54 = vsub.s32 0, %v53
    %v55 = vrot.slane %v50, %v54
    %v59 = vunpack.c.l.b16 %v44
    %v60 = vunpack.c.l.b16 %v45
    %v61 = vpack.c.b16 %v60, %v59
    %v66 = vunpack.c.l.b16 %v46
    %v67 = vunpack.c.l.b16 %v47
    %v68 = vunpack.c.l.b16 %v48
    %v69 = vunpack.c.l.b16 %v49
    %v70 = vpack.c.b16 %v67, %v66
    %v71 = vpack.c.b16 %v69, %v68
    %vm74 = vcmask 261120
    %v76 = vsel %vm74, %v61, 0
    %78 = vmatprep.subr.bf16.mxu0 0
    %79 = vmatpush1.bf16.msra.mxu0 %v70
    %80 = vmatprep.subr.bf16.mxu0 0
    %81 = vmatpush1.bf16.msra.mxu0 %v71
    %82 = vmatprep.subr.bf16.mxu0 0
    %83 = vmatpush1.bf16.msra.mxu0 0
    %84 = vmatprep.subr.bf16.mxu0 0
    %85 = vmatpush1.bf16.msra.mxu0 0
    %86 = vmatprep.subr.bf16.mxu0 0
    %87 = vmatpush1.bf16.msra.mxu0 0
    %88 = vmatprep.subr.bf16.mxu0 0
    %89 = vmatpush1.bf16.msra.mxu0 0
    %90 = vmatprep.subr.bf16.mxu0 0
    %91 = vmatpush1.bf16.msra.mxu0 0
    %92 = vmatprep.subr.bf16.mxu0 0
    %93 = vmatpush1.bf16.msra.mxu0 0
    %94 = vmatprep.subr.bf16.mxu0 0
    %95 = vmatpush1.bf16.msra.mxu0 0
    %96 = vmatprep.subr.bf16.mxu0 0
    %97 = vmatpush1.bf16.msra.mxu0 0
    %98 = vmatprep.subr.bf16.mxu0 0
    %99 = vmatpush1.bf16.msra.mxu0 0
    %100 = vmatprep.subr.bf16.mxu0 0
    %101 = vmatpush1.bf16.msra.mxu0 0
    %102 = vmatprep.subr.bf16.mxu0 0
    %103 = vmatpush1.bf16.msra.mxu0 0
    %104 = vmatprep.subr.bf16.mxu0 0
    %105 = vmatpush1.bf16.msra.mxu0 0
    %106 = vmatprep.subr.bf16.mxu0 0
    %107 = vmatpush1.bf16.msra.mxu0 0
    %108 = vmatprep.subr.bf16.mxu0 0
    %109 = vmatpush1.bf16.msra.mxu0 0
    %110 = vmatprep.mubr.bf16.mxu0 0
    %111 = vmatmul.mubr.bf16.gmra.mrb[0].mxu0 %v76
    %v112 = vpop.f32.mrb[0].mxu0
    %v113 = vadd.f32 %v55, %v112
    %v114 = vpop.f32.mrb[0].mxu0
    %v115 = vpop.f32.mrb[0].mxu0
    %v116 = vadd.f32 %v55, %v115
    %v117 = vpop.f32.mrb[0].mxu0
    %118 = vdwg.mxu0
    %v119 = vmul.f32 %v113, 0.5
    %v120 = vmul.f32 %v116, 0.5
    %v121 = vmul.f32 %v113, 0.70710677
    %v122 = vmul.f32 %v116, 0.70710677
    %v123 = verf.f32.pop %v121
    %v124 = verf.f32.pop %v122
    %v125 = vadd.f32 %v123, 1.0
    %v126 = vadd.f32 %v124, 1.0
    %v127 = vmul.f32 %v119, %v125
    %v128 = vmul.f32 %v120, %v126
    %129 = vst [vmem:[#allocation7] sm:$0xff] %v127
    %130 = vst [vmem:[#allocation7 + $0x8] sm:$0xff] %v128
    // Predicated region
    $region22: #{tpu_custom_call.1} parent=1 // pred_check
      _
    $region23: #{tpu_custom_call.1} parent=1 // pred_check_branch
      %132 = sbr.rel (0) target = $region25
    $region24: #{tpu_custom_call.1} parent=1 // pred_region
      %s134 = ssub.s32 256, 256
      %135 = vsyncadd [#allocation4], %s134
      %s136 = sshll.u32 [#allocation7], 4
      %s137 = int_to_ptr.vmem [resolvable:$true] %s136
      %142 = dma.vmem_to_hbm [thread:$0]  %s137, 256, %s3, [#allocation4], 128, 128, 8
    $region25: #{tpu_custom_call.1} parent=1 // pred_fallthru
      _
    // Predicated region
    $region26: #{tpu_custom_call.1} parent=1 // pred_check
      _
    $region27: #{tpu_custom_call.1} parent=1 // pred_check_branch
      %144 = sbr.rel (0) target = $region29
    $region28: #{tpu_custom_call.1} parent=1 // pred_region
      %145 = dma.done [#allocation4], 256
    $region29: #{tpu_custom_call.1} parent=1 // pred_fallthru
      _
    %146 = vsyncpa [#allocation3], 1
    %147 = vsyncpa [#allocation6], 1
    %148 = vsyncpa [#allocation4], 1

</llo_original>
